<compile_context>
chip_gen: v6e
topology: v6e:2x2x1
jax: 0.10.0
libtpu: 0.0.40
codegen_flags: <defaults>
</compile_context>

<pallas_src>
import functools

import jax
import jax.numpy as jnp
from jax import lax
from jax.experimental import pallas as pl
from jax.experimental.pallas import tpu as pltpu

EPS = 1e-5
VMEM_LIMIT_BYTES = 32 * 1024 * 1024  # safe on v5e/v6e (128 MiB) and v7x (64 MiB) parts


def _conv_relu_stats_kernel(xc_ref, w_ref, y_ref, stats_ref):
    """One im2col matmul + ReLU + per-tile BN partial sums.

    xc_ref:    (ROW_TILE, Kp)   bf16 im2col rows (Kp = KH*KW*Cin padded to mult of 16)
    w_ref:     (Kp, Cout)       bf16 weight slab
    y_ref:     (ROW_TILE, Cout) bf16 conv+relu activations (lane-dense, Cout last)
    stats_ref: (1, 2, Cout)     f32 [sum(y), sum(y*y)] over this tile's rows
    """
    acc = jnp.dot(xc_ref[...], w_ref[...], preferred_element_type=jnp.float32)
    y = jnp.maximum(acc, 0.0)                                   # ReLU, f32
    y_ref[...] = y.astype(y_ref.dtype)                          # bf16 store (full-width vst)
    s = jnp.sum(y, axis=0, keepdims=True)                       # (1, Cout) f32
    sq = jnp.sum(y * y, axis=0, keepdims=True)                  # (1, Cout) f32
    stats_ref[0] = jnp.concatenate([s, sq], axis=0)             # (2, Cout)


def _bn_apply_kernel(y_ref, scale_ref, shift_ref, o_ref):
    """In-place BatchNorm affine: o = y * scale + shift (scale/shift precomputed).

    y_ref/o_ref: (ROW_TILE, Cout) bf16 (aliased buffers)
    scale/shift: (1, Cout) f32
    """
    y = y_ref[...].astype(jnp.float32)
    o_ref[...] = (y * scale_ref[...] + shift_ref[...]).astype(o_ref.dtype)


def basic_conv2d_forward(x, w, gamma, beta, *, padding=1, eps=EPS, row_tile=256):
    """x: (N, Cin, H, W) NCHW; w: (Cout, Cin, KH, KW); gamma/beta: (Cout,). Returns NCHW f32."""
    n, c_in, h, w_sp = x.shape
    c_out, c_in_w, kh, kw = w.shape
    assert c_in == c_in_w
    h_out = h + 2 * padding - kh + 1
    w_out = w_sp + 2 * padding - kw + 1
    total_rows = n * h_out * w_out
    assert total_rows % row_tile == 0, "demo assumes row_tile divides N*H_out*W_out"
    assert row_tile % 8 == 0
    num_tiles = total_rows // row_tile
    k_dim = kh * kw * c_in

    # ---- wrapper-side im2col pack (layout plumbing; see TODO about moving in-kernel) ----
    x_nhwc = jnp.transpose(x, (0, 2, 3, 1))
    x_pad = jnp.pad(x_nhwc, ((0, 0), (padding, padding), (padding, padding), (0, 0)))
    # (N, Ho, Wo, KH*KW, Cin): tap index = kh*KW + kw, matching the weight reshape below.
    patches = jnp.stack(
        [x_pad[:, i:i + h_out, j:j + w_out, :] for i in range(kh) for j in range(kw)],
        axis=3)
    x_cols = patches.reshape(total_rows, k_dim)
    w_k = jnp.transpose(w, (2, 3, 1, 0)).reshape(k_dim, c_out)   # (KH*KW*Cin, Cout)

    # Pad the contraction dim to a multiple of 16 (bf16 (16,128) packing friendly).
    k_pad = (-k_dim) % 16
    if k_pad:
        x_cols = jnp.pad(x_cols, ((0, 0), (0, k_pad)))
        w_k = jnp.pad(w_k, ((0, k_pad), (0, 0)))
    k_dim_p = k_dim + k_pad

    x_cols = x_cols.astype(jnp.bfloat16)
    w_k = w_k.astype(jnp.bfloat16)

    # ---- kernel 1: conv (single matmul) + ReLU + per-tile BN partial sums ----
    y_flat, stats = pl.pallas_call(
        _conv_relu_stats_kernel,
        grid=(num_tiles,),
        in_specs=[
            pl.BlockSpec((row_tile, k_dim_p), lambda i: (i, 0)),
            pl.BlockSpec((k_dim_p, c_out), lambda i: (0, 0)),
        ],
        out_specs=[
            pl.BlockSpec((row_tile, c_out), lambda i: (i, 0)),
            pl.BlockSpec((1, 2, c_out), lambda i: (i, 0, 0)),
        ],
        out_shape=[
            jax.ShapeDtypeStruct((total_rows, c_out), jnp.bfloat16),
            jax.ShapeDtypeStruct((num_tiles, 2, c_out), jnp.float32),
        ],
        compiler_params=pltpu.CompilerParams(
            dimension_semantics=("parallel",),
            vmem_limit_bytes=VMEM_LIMIT_BYTES),
    )(x_cols, w_k)

    # ---- tiny XLA reduce: fold per-tile sums into one (scale, shift) pair ----
    # (Hoisted out of the per-tile loop; kernel 2 is then a pure FMA stream.)
    totals = jnp.sum(stats, axis=0)                              # (2, Cout) f32
    inv_count = 1.0 / float(total_rows)
    mean = totals[0] * inv_count
    var = jnp.maximum(totals[1] * inv_count - mean * mean, 0.0)  # biased batch var
    scale_v = gamma.astype(jnp.float32) * lax.rsqrt(var + eps)
    shift_v = beta.astype(jnp.float32) - mean * scale_v
    scale = scale_v.reshape(1, c_out)
    shift = shift_v.reshape(1, c_out)

    # ---- kernel 2: in-place BN apply (aliased, bf16, lane-dense FMA) ----
    y_norm = pl.pallas_call(
        _bn_apply_kernel,
        grid=(num_tiles,),
        in_specs=[
            pl.BlockSpec((row_tile, c_out), lambda i: (i, 0)),
            pl.BlockSpec((1, c_out), lambda i: (0, 0)),
            pl.BlockSpec((1, c_out), lambda i: (0, 0)),
        ],
        out_specs=pl.BlockSpec((row_tile, c_out), lambda i: (i, 0)),
        out_shape=jax.ShapeDtypeStruct((total_rows, c_out), jnp.bfloat16),
        input_output_aliases={0: 0},
        compiler_params=pltpu.CompilerParams(
            dimension_semantics=("parallel",),
            vmem_limit_bytes=VMEM_LIMIT_BYTES),
    )(y_flat, scale, shift)

    # Back to PyTorch NCHW, f32.
    y = y_norm.astype(jnp.float32).reshape(n, h_out, w_out, c_out)
    return jnp.transpose(y, (0, 3, 1, 2))


if __name__ == "__main__":
    # Small demo shapes: batch=2, Cin=4, 16x16 spatial, 3x3 kernel, padding=1, Cout=128
    # (Cout=128 keeps every store a full 128-lane vst).
    N, C_IN, C_OUT, H, W = 2, 4, 128, 16, 16
    KH = KW = 3
    PAD = 1
    ROW_TILE = 256   # 2 parallel grid steps for the demo (keeps both v7x TCs busy)

    key = jax.random.PRNGKey(0)
    kx, kw_, kg, kb = jax.random.split(key, 4)
    x = jax.random.normal(kx, (N, C_IN, H, W), dtype=jnp.float32)
    w = jax.random.normal(kw_, (C_OUT, C_IN, KH, KW), dtype=jnp.float32) * 0.1
    gamma = 1.0 + 0.05 * jax.random.normal(kg, (C_OUT,), dtype=jnp.float32)
    beta = 0.05 * jax.random.normal(kb, (C_OUT,), dtype=jnp.float32)

    fwd = jax.jit(functools.partial(basic_conv2d_forward, padding=PAD, row_tile=ROW_TILE))
    out = jax.block_until_ready(fwd(x, w, gamma, beta))

    # Pure-JAX f32 reference: Conv2d(bias=False) -> ReLU -> BatchNorm2d (batch stats).
    conv = lax.conv_general_dilated(x, w, window_strides=(1, 1),
                                    padding=((PAD, PAD), (PAD, PAD)),
                                    dimension_numbers=("NCHW", "OIHW", "NCHW"))
    r = jnp.maximum(conv, 0.0)
    mean = r.mean(axis=(0, 2, 3), keepdims=True)
    var = r.var(axis=(0, 2, 3), keepdims=True)
    ref = (r - mean) * lax.rsqrt(var + EPS) * gamma.reshape(1, -1, 1, 1) \
          + beta.reshape(1, -1, 1, 1)

    assert out.shape == (N, C_OUT, H, W)
    assert out.dtype == jnp.float32
    # Tolerance budget: kernel feeds the MXU bf16 and stores activations/output as bf16
    # (~2^-8 relative each) while the reference is f32 end-to-end; accumulation and BN
    # statistics stay f32. A real ordering/indexing bug would produce O(1) errors.
    max_err = float(jnp.max(jnp.abs(out - ref)))
    assert jnp.allclose(out, ref, atol=3e-2, rtol=3e-2), max_err
    print("KERNEL_OK")
</pallas_src>

<mosaic_0001>
module attributes {stable_mosaic.version = 11 : i64} {
  func.func @_conv_relu_stats_kernel(%arg0: i32, %arg1: memref<256x48xbf16, #tpu.memory_space<vmem>>, %arg2: memref<48x128xbf16, #tpu.memory_space<vmem>>, %arg3: memref<256x128xbf16, #tpu.memory_space<vmem>>, %arg4: memref<1x2x128xf32, #tpu.memory_space<vmem>>) attributes {dimension_semantics = [#tpu.dimension_semantics<parallel>], iteration_bounds = array<i64: 2>, scalar_prefetch = 0 : i64, scratch_operands = 0 : i64, tpu.core_type = #tpu.core_type<tc>, window_params = [{transform_indices = @transform_0, window_bounds = array<i64: 256, 48>}, {pipeline_mode = #tpu.pipeline_mode<synchronous>, transform_indices = @transform_1, window_bounds = array<i64: 48, 128>}, {transform_indices = @transform_2, window_bounds = array<i64: 256, 128>}, {transform_indices = @transform_3, window_bounds = array<i64: 1, 2, 128>}]} {
    %c0 = arith.constant 0 : index
    %c0_0 = arith.constant 0 : index
    %0 = vector.load %arg1[%c0, %c0_0] : memref<256x48xbf16, #tpu.memory_space<vmem>>, vector<256x48xbf16>
    %c0_1 = arith.constant 0 : index
    %c0_2 = arith.constant 0 : index
    %1 = vector.load %arg2[%c0_1, %c0_2] : memref<48x128xbf16, #tpu.memory_space<vmem>>, vector<48x128xbf16>
    %cst = arith.constant dense<0.000000e+00> : vector<256x128xf32>
    %2 = tpu.matmul %0, %1, %cst {dimension_numbers = #tpu.dot_dimension_numbers<[1], [0], [0], [1], [0, 0, 1, 1], [], []>} : vector<256x48xbf16>, vector<48x128xbf16>, vector<256x128xf32> -> vector<256x128xf32>
    %cst_3 = arith.constant 0.000000e+00 : f32
    %3 = vector.broadcast %cst_3 : f32 to vector<256x128xf32>
    %4 = arith.maximumf %2, %3 : vector<256x128xf32>
    %5 = arith.truncf %4 : vector<256x128xf32> to vector<256x128xbf16>
    %c0_4 = arith.constant 0 : index
    %c0_5 = arith.constant 0 : index
    %6 = vector.load %arg3[%c0_4, %c0_5] : memref<256x128xbf16, #tpu.memory_space<vmem>>, vector<256x128xbf16>
    tpu.vector_store %arg3[%c0_4, %c0_5], %5 {strides = array<i32>} : memref<256x128xbf16, #tpu.memory_space<vmem>>, vector<256x128xbf16>,
    %cst_6 = arith.constant dense<0.000000e+00> : vector<128xf32>
    %7 = vector.multi_reduction <add>, %4, %cst_6 [0] : vector<256x128xf32> to vector<128xf32>
    %8 = vector.shape_cast %7 : vector<128xf32> to vector<1x128xf32>
    %9 = arith.mulf %4, %4 : vector<256x128xf32>
    %cst_7 = arith.constant dense<0.000000e+00> : vector<128xf32>
    %10 = vector.multi_reduction <add>, %9, %cst_7 [0] : vector<256x128xf32> to vector<128xf32>
    %11 = vector.shape_cast %10 : vector<128xf32> to vector<1x128xf32>
    %12 = tpu.concatenate %8, %11 in 0 : vector<1x128xf32>, vector<1x128xf32> -> vector<2x128xf32>
    %c0_8 = arith.constant 0 : index
    %c0_9 = arith.constant 0 : index
    %c0_10 = arith.constant 0 : index
    %13 = vector.load %arg4[%c0_8, %c0_9, %c0_10] : memref<1x2x128xf32, #tpu.memory_space<vmem>>, vector<1x2x128xf32>
    %14 = vector.shape_cast %13 : vector<1x2x128xf32> to vector<2x128xf32>
    %15 = vector.shape_cast %12 : vector<2x128xf32> to vector<1x2x128xf32>
    tpu.vector_store %arg4[%c0_8, %c0_9, %c0_10], %15 {strides = array<i32>} : memref<1x2x128xf32, #tpu.memory_space<vmem>>, vector<1x2x128xf32>,
    return
  }
  func.func @transform_0(%arg0: i32) -> (i32, i32) {
    %c0_i32 = arith.constant 0 : i32
    %c0_i32_0 = arith.constant 0 : i32
    return %arg0, %c0_i32 : i32, i32
  }
  func.func @transform_1(%arg0: i32) -> (i32, i32) {
    %c0_i32 = arith.constant 0 : i32
    %c0_i32_0 = arith.constant 0 : i32
    %c0_i32_1 = arith.constant 0 : i32
    return %c0_i32, %c0_i32_0 : i32, i32
  }
  func.func @transform_2(%arg0: i32) -> (i32, i32) {
    %c0_i32 = arith.constant 0 : i32
    %c0_i32_0 = arith.constant 0 : i32
    return %arg0, %c0_i32 : i32, i32
  }
  func.func @transform_3(%arg0: i32) -> (i32, i32, i32) {
    %c0_i32 = arith.constant 0 : i32
    %c0_i32_0 = arith.constant 0 : i32
    %c0_i32_1 = arith.constant 0 : i32
    return %arg0, %c0_i32, %c0_i32_0 : i32, i32, i32
  }
}

module attributes {stable_mosaic.version = 11 : i64} {
  func.func @_bn_apply_kernel(%arg0: i32, %arg1: memref<256x128xbf16, #tpu.memory_space<vmem>>, %arg2: memref<1x128xf32, #tpu.memory_space<vmem>>, %arg3: memref<1x128xf32, #tpu.memory_space<vmem>>, %arg4: memref<256x128xbf16, #tpu.memory_space<vmem>>) attributes {dimension_semantics = [#tpu.dimension_semantics<parallel>], iteration_bounds = array<i64: 2>, scalar_prefetch = 0 : i64, scratch_operands = 0 : i64, tpu.core_type = #tpu.core_type<tc>, window_params = [{transform_indices = @transform_0, window_bounds = array<i64: 256, 128>}, {pipeline_mode = #tpu.pipeline_mode<synchronous>, transform_indices = @transform_1, window_bounds = array<i64: 1, 128>}, {pipeline_mode = #tpu.pipeline_mode<synchronous>, transform_indices = @transform_2, window_bounds = array<i64: 1, 128>}, {transform_indices = @transform_3, window_bounds = array<i64: 256, 128>}]} {
    %c0 = arith.constant 0 : index
    %c0_0 = arith.constant 0 : index
    %0 = vector.load %arg1[%c0, %c0_0] : memref<256x128xbf16, #tpu.memory_space<vmem>>, vector<256x128xbf16>
    %1 = arith.extf %0 : vector<256x128xbf16> to vector<256x128xf32>
    %c0_1 = arith.constant 0 : index
    %c0_2 = arith.constant 0 : index
    %2 = vector.load %arg2[%c0_1, %c0_2] : memref<1x128xf32, #tpu.memory_space<vmem>>, vector<1x128xf32>
    %3 = vector.broadcast %2 : vector<1x128xf32> to vector<256x128xf32>
    %4 = arith.mulf %1, %3 : vector<256x128xf32>
    %c0_3 = arith.constant 0 : index
    %c0_4 = arith.constant 0 : index
    %5 = vector.load %arg3[%c0_3, %c0_4] : memref<1x128xf32, #tpu.memory_space<vmem>>, vector<1x128xf32>
    %6 = vector.broadcast %5 : vector<1x128xf32> to vector<256x128xf32>
    %7 = arith.addf %4, %6 : vector<256x128xf32>
    %8 = arith.truncf %7 : vector<256x128xf32> to vector<256x128xbf16>
    %c0_5 = arith.constant 0 : index
    %c0_6 = arith.constant 0 : index
    %9 = vector.load %arg4[%c0_5, %c0_6] : memref<256x128xbf16, #tpu.memory_space<vmem>>, vector<256x128xbf16>
    tpu.vector_store %arg4[%c0_5, %c0_6], %8 {strides = array<i32>} : memref<256x128xbf16, #tpu.memory_space<vmem>>, vector<256x128xbf16>,
    return
  }
  func.func @transform_0(%arg0: i32) -> (i32, i32) {
    %c0_i32 = arith.constant 0 : i32
    %c0_i32_0 = arith.constant 0 : i32
    return %arg0, %c0_i32 : i32, i32
  }
  func.func @transform_1(%arg0: i32) -> (i32, i32) {
    %c0_i32 = arith.constant 0 : i32
    %c0_i32_0 = arith.constant 0 : i32
    %c0_i32_1 = arith.constant 0 : i32
    return %c0_i32, %c0_i32_0 : i32, i32
  }
  func.func @transform_2(%arg0: i32) -> (i32, i32) {
    %c0_i32 = arith.constant 0 : i32
    %c0_i32_0 = arith.constant 0 : i32
    %c0_i32_1 = arith.constant 0 : i32
    return %c0_i32, %c0_i32_0 : i32, i32
  }
  func.func @transform_3(%arg0: i32) -> (i32, i32) {
    %c0_i32 = arith.constant 0 : i32
    %c0_i32_0 = arith.constant 0 : i32
    return %arg0, %c0_i32 : i32, i32
  }
}

</mosaic_0001>

<llo_original>
// kernel: basic_conv2d_forward.3
$region0: #{basic_conv2d_forward.3}
  #allocation0 [shape = 'u32[]', space=smem, size = 0x4, offset = 0x4, fixed_abs, tag = 'smem constant byte address 0x4 - core index']
  #allocation1 [shape = 'u32[144,128]{1,0:T(1,128)}', space=vmem, size = 0x12000, scoped, tag = 'internal scratch']
  %s0 = inlined_call_operand.vmem [shape: bf16[512,128], index: 0, kind: input, shape index: {}, may-alias: {0,3}]
  %s1 = inlined_call_operand.vmem [shape: f32[1,128], index: 1, kind: input, shape index: {}]
  %s2 = inlined_call_operand.vmem [shape: f32[1,128], index: 2, kind: input, shape index: {}]
  %s3 = inlined_call_operand.vmem [shape: bf16[512,128], index: 3, kind: output, shape index: {}, may-alias: {0,3}]
  %s4 = sld [smem:[#allocation0]]
  $region45: #{basic_conv2d_forward.3} parent=0
    _
  %s6 = ssub.s32 1, %s4
  %s7 = scalar_select 0, %s6, %s4
  loop: start=0, step=1, limit=4
  $region2: #{basic_conv2d_forward.3} parent=0 // loop_pre_header
    _
  $region3: #{basic_conv2d_forward.3} parent=0 // loop_header
    %s9 = sphi 0, %s13
    %p10 = scmp.ge.s32.totalorder %s9, 4
    %s19 = sphi 0, %s21
    %s22 = sphi 0, %s19
    %s23 = sphi 0, %s22
    %s39 = sphi 0, %s23
    %s43 = sphi 0, %s43
    %s45 = sphi 0, %s43
    %s46 = sphi 0, %s45
    %s60 = sphi 0, %s46
    %s64 = sphi 0, %s64
    %s66 = sphi 0, %s64
    %s67 = sphi 0, %s66
    %s81 = sphi 0, %s67
    %s87 = sphi 0, %s89
    %s90 = sphi 0, %s87
    %s91 = sphi 0, %s90
    %s107 = sphi 0, %s91
  $region4: #{basic_conv2d_forward.3} parent=0 // loop_header_branch
    %12 = sbr.rel (%p10) target = $region8
  $region5: #{basic_conv2d_forward.3} parent=0 // loop_body
    %s14 = ssub.s32 %s9, 1
    %s15 = ssub.s32 %s9, 2
    %s16 = sadd.s32 %s9, 1
    %s17 = ssub.s32 %s9, %s16
    %p18 = scmp.eq.s32.totalorder %s17, 0
    %s20 = sadd.s32 %s19, 1
    %s21 = scalar_select %p18, %s19, %s20
    %p24 = pneg %p18
    %p25 = scmp.eq.s32.totalorder %s9, 1
    %p26 = por %p24, %p25
    %p27 = scmp.ne.s32.totalorder %s19, %s22
    %p28 = scmp.eq.s32.totalorder %s9, 0
    %p29 = por %p27, %p28
    %p30 = scmp.ne.s32.totalorder %s19, %s22
    %p31 = scmp.eq.s32.totalorder %s14, 1
    %p32 = por %p30, %p31
    %p33 = scmp.ne.s32.totalorder %s22, %s23
    %p34 = scmp.eq.s32.totalorder %s14, 0
    %p35 = por %p33, %p34
    %p36 = scmp.ne.s32.totalorder %s22, %s23
    %p37 = scmp.eq.s32.totalorder %s15, 1
    %p38 = por %p36, %p37
    %p40 = scmp.ne.s32.totalorder %s23, %s39
    %p41 = scmp.eq.s32.totalorder %s15, 0
    %p42 = por %p40, %p41
    %s44 = sadd.s32 %s43, 1
    %p47 = scmp.eq.s32.totalorder %s9, 1
    %p48 = scmp.ne.s32.totalorder %s43, %s45
    %p49 = scmp.eq.s32.totalorder %s9, 0
    %p50 = por %p48, %p49
    %p51 = scmp.ne.s32.totalorder %s43, %s45
    %p52 = scmp.eq.s32.totalorder %s14, 1
    %p53 = por %p51, %p52
    %p54 = scmp.ne.s32.totalorder %s45, %s46
    %p55 = scmp.eq.s32.totalorder %s14, 0
    %p56 = por %p54, %p55
    %p57 = scmp.ne.s32.totalorder %s45, %s46
    %p58 = scmp.eq.s32.totalorder %s15, 1
    %p59 = por %p57, %p58
    %p61 = scmp.ne.s32.totalorder %s46, %s60
    %p62 = scmp.eq.s32.totalorder %s15, 0
    %p63 = por %p61, %p62
    %s65 = sadd.s32 %s64, 1
    %p68 = scmp.eq.s32.totalorder %s9, 1
    %p69 = scmp.ne.s32.totalorder %s64, %s66
    %p70 = scmp.eq.s32.totalorder %s9, 0
    %p71 = por %p69, %p70
    %p72 = scmp.ne.s32.totalorder %s64, %s66
    %p73 = scmp.eq.s32.totalorder %s14, 1
    %p74 = por %p72, %p73
    %p75 = scmp.ne.s32.totalorder %s66, %s67
    %p76 = scmp.eq.s32.totalorder %s14, 0
    %p77 = por %p75, %p76
    %p78 = scmp.ne.s32.totalorder %s66, %s67
    %p79 = scmp.eq.s32.totalorder %s15, 1
    %p80 = por %p78, %p79
    %p82 = scmp.ne.s32.totalorder %s67, %s81
    %p83 = scmp.eq.s32.totalorder %s15, 0
    %p84 = por %p82, %p83
    %s85 = ssub.s32 %s9, %s16
    %p86 = scmp.eq.s32.totalorder %s85, 0
    %s88 = sadd.s32 %s87, 1
    %s89 = scalar_select %p86, %s87, %s88
    %p92 = pneg %p86
    %p93 = scmp.eq.s32.totalorder %s9, 1
    %p94 = por %p92, %p93
    %p95 = scmp.ne.s32.totalorder %s87, %s90
    %p96 = scmp.eq.s32.totalorder %s9, 0
    %p97 = por %p95, %p96
    %p98 = scmp.ne.s32.totalorder %s87, %s90
    %p99 = scmp.eq.s32.totalorder %s14, 1
    %p100 = por %p98, %p99
    %p101 = scmp.ne.s32.totalorder %s90, %s91
    %p102 = scmp.eq.s32.totalorder %s14, 0
    %p103 = por %p101, %p102
    %p104 = scmp.ne.s32.totalorder %s90, %s91
    %p105 = scmp.eq.s32.totalorder %s15, 1
    %p106 = por %p104, %p105
    %p108 = scmp.ne.s32.totalorder %s91, %s107
    %p109 = scmp.eq.s32.totalorder %s15, 0
    %p110 = por %p108, %p109
    %p111 = scmp.le.s32.totalorder 1, %s9
    %p112 = scmp.lt.s32.totalorder %s9, 3
    %p113 = pnand %p111, %p112
    %p114 = pneg %p113
    // Predicated region
    $region9: #{basic_conv2d_forward.3} parent=5 // pred_check
      _
    $region10: #{basic_conv2d_forward.3} parent=5 // pred_check_branch
      %116 = sbr.rel (%p113) target = $region12
    $region11: #{basic_conv2d_forward.3} parent=5 // pred_region
      %s117 = ssub.s32 %s9, 1
      // Predicated region
      $region13: #{basic_conv2d_forward.3} parent=11 // pred_check
        %p118 = pneg %p56
      $region14: #{basic_conv2d_forward.3} parent=11 // pred_check_branch
        %120 = sbr.rel (%p118) target = $region16
      $region15: #{basic_conv2d_forward.3} parent=11 // pred_region
        _
      $region16: #{basic_conv2d_forward.3} parent=11 // pred_fallthru
        _
      // Predicated region
      $region17: #{basic_conv2d_forward.3} parent=11 // pred_check
        %p121 = pneg %p77
      $region18: #{basic_conv2d_forward.3} parent=11 // pred_check_branch
        %123 = sbr.rel (%p121) target = $region20
      $region19: #{basic_conv2d_forward.3} parent=11 // pred_region
        _
      $region20: #{basic_conv2d_forward.3} parent=11 // pred_fallthru
        _
    $region12: #{basic_conv2d_forward.3} parent=5 // pred_fallthru
      _
    %p124 = scmp.lt.s32.totalorder %s9, 2
    // Predicated region
    $region21: #{basic_conv2d_forward.3} parent=5 // pred_check
      %p125 = pneg %p124
    $region22: #{basic_conv2d_forward.3} parent=5 // pred_check_branch
      %127 = sbr.rel (%p125) target = $region24
    $region23: #{basic_conv2d_forward.3} parent=5 // pred_region
      // Predicated region
      $region25: #{basic_conv2d_forward.3} parent=23 // pred_check
        %p128 = pneg %p29
      $region26: #{basic_conv2d_forward.3} parent=23 // pred_check_branch
        %130 = sbr.rel (%p128) target = $region28
      $region27: #{basic_conv2d_forward.3} parent=23 // pred_region
        %s131 = smul.u32 32, %s9
        %p132 = scmp.lt.s32.totalorder %s131, 63
        %s133 = scalar_select %p132, %s131, 63
        %s134 = smul.addr %s133, 4
        %s135 = scalar_lea.vmem %s0, %s134
        %s136 = smul.u32 32, %s9
      $region28: #{basic_conv2d_forward.3} parent=23 // pred_fallthru
        _
    $region24: #{basic_conv2d_forward.3} parent=5 // pred_fallthru
      _
    %p137 = scmp.le.s32.totalorder 1, %s9
    %p138 = scmp.lt.s32.totalorder %s9, 3
    %p139 = pnand %p137, %p138
    %p140 = pneg %p139
    // Predicated region
    $region29: #{basic_conv2d_forward.3} parent=5 // pred_check
      _
    $region30: #{basic_conv2d_forward.3} parent=5 // pred_check_branch
      %142 = sbr.rel (%p139) target = $region32
    $region31: #{basic_conv2d_forward.3} parent=5 // pred_region
      %s143 = ssub.s32 %s9, 1
      %s144 = smul.u32 32, %s14
      %p145 = scmp.lt.s32.totalorder %s144, 63
      %s146 = scalar_select %p145, %s144, 63
      %s147 = smul.addr %s146, 4
      %s148 = scalar_lea.vmem %s0, %s147
      %p149 = pneg %p35
      %p150 = pneg %p32
      %p151 = pneg %p56
      %p152 = pneg %p53
      %p153 = pneg %p77
      %p154 = pneg %p74
      %p155 = pneg %p103
      %p156 = pneg %p100
      %s157 = smul.u32 32, %s14
      %p158 = scmp.lt.s32.totalorder %s157, 63
      %s159 = scalar_select %p158, %s157, 63
      %s160 = smul.addr %s159, 4
      %s161 = scalar_lea.vmem %s3, %s160
      %s162 = smul.u32 32, %s14
      %p163 = scmp.lt.s32.totalorder %s162, 63
      %s164 = scalar_select %p163, %s162, 63
      %s165 = smul.addr %s164, 4
      %s166 = scalar_lea.vmem %s0, %s165
      %s167 = smul.u32 32, %s14
      %s168 = smul.u32 32, %s14
      %p169 = scmp.lt.s32.totalorder %s168, 63
      %s170 = scalar_select %p169, %s168, 63
      %s171 = smul.addr %s170, 4
      %s172 = scalar_lea.vmem %s3, %s171
      %s173 = smul.u32 32, %s14
      %v174 = vld [vmem:[%s166] sm:$0xf]
      %v175 = vld [vmem:[%s166 + $0x4] sm:$0xf]
      %v176 = vld [vmem:[%s166 + $0x8] sm:$0xf]
      %v177 = vld [vmem:[%s166 + $0xc] sm:$0xf]
      %v178 = vld [vmem:[%s166 + $0x10] sm:$0xf]
      %v179 = vld [vmem:[%s166 + $0x14] sm:$0xf]
      %v180 = vld [vmem:[%s166 + $0x18] sm:$0xf]
      %v181 = vld [vmem:[%s166 + $0x1c] sm:$0xf]
      %v182 = vld [vmem:[%s166 + $0x20] sm:$0xf]
      %v183 = vld [vmem:[%s166 + $0x24] sm:$0xf]
      %v184 = vld [vmem:[%s166 + $0x28] sm:$0xf]
      %v185 = vld [vmem:[%s166 + $0x2c] sm:$0xf]
      %v186 = vld [vmem:[%s166 + $0x30] sm:$0xf]
      %v187 = vld [vmem:[%s166 + $0x34] sm:$0xf]
      %v188 = vld [vmem:[%s166 + $0x38] sm:$0xf]
      %v189 = vld [vmem:[%s166 + $0x3c] sm:$0xf]
      %v190 = vld [vmem:[%s166 + $0x40] sm:$0xf]
      %v191 = vld [vmem:[%s166 + $0x44] sm:$0xf]
      %v192 = vld [vmem:[%s166 + $0x48] sm:$0xf]
      %v193 = vld [vmem:[%s166 + $0x4c] sm:$0xf]
      %v194 = vld [vmem:[%s166 + $0x50] sm:$0xf]
      %v195 = vld [vmem:[%s166 + $0x54] sm:$0xf]
      %v196 = vld [vmem:[%s166 + $0x58] sm:$0xf]
      %v197 = vld [vmem:[%s166 + $0x5c] sm:$0xf]
      %v198 = vld [vmem:[%s166 + $0x60] sm:$0xf]
      %v199 = vld [vmem:[%s166 + $0x64] sm:$0xf]
      %v200 = vld [vmem:[%s166 + $0x68] sm:$0xf]
      %v201 = vld [vmem:[%s166 + $0x6c] sm:$0xf]
      %v202 = vld [vmem:[%s166 + $0x70] sm:$0xf]
      %v203 = vld [vmem:[%s166 + $0x74] sm:$0xf]
      %v204 = vld [vmem:[%s166 + $0x78] sm:$0xf]
      %v205 = vld [vmem:[%s166 + $0x7c] sm:$0xf]
      %v206 = vunpack.c.l.bf16 %v174
      %v207 = vunpack.c.l.bf16 %v175
      %v208 = vunpack.c.l.bf16 %v176
      %v209 = vunpack.c.l.bf16 %v177
      %v210 = vunpack.c.l.bf16 %v178
      %v211 = vunpack.c.l.bf16 %v179
      %v212 = vunpack.c.l.bf16 %v180
      %v213 = vunpack.c.l.bf16 %v181
      %v214 = vunpack.c.l.bf16 %v182
      %v215 = vunpack.c.l.bf16 %v183
      %v216 = vunpack.c.l.bf16 %v184
      %v217 = vunpack.c.l.bf16 %v185
      %v218 = vunpack.c.l.bf16 %v186
      %v219 = vunpack.c.l.bf16 %v187
      %v220 = vunpack.c.l.bf16 %v188
      %v221 = vunpack.c.l.bf16 %v189
      %v222 = vunpack.c.l.bf16 %v190
      %v223 = vunpack.c.l.bf16 %v191
      %v224 = vunpack.c.l.bf16 %v192
      %v225 = vunpack.c.l.bf16 %v193
      %v226 = vunpack.c.l.bf16 %v194
      %v227 = vunpack.c.l.bf16 %v195
      %v228 = vunpack.c.l.bf16 %v196
      %v229 = vunpack.c.l.bf16 %v197
      %v230 = vunpack.c.l.bf16 %v198
      %v231 = vunpack.c.l.bf16 %v199
      %v232 = vunpack.c.l.bf16 %v200
      %v233 = vunpack.c.l.bf16 %v201
      %v234 = vunpack.c.l.bf16 %v202
      %v235 = vunpack.c.l.bf16 %v203
      %v236 = vunpack.c.l.bf16 %v204
      %v237 = vunpack.c.l.bf16 %v205
      %v238 = vld [vmem:[%s1] sm:$0x1]
      %v240 = vlaneseq
      %v241 = vshrl.u32 %v240, 7
      %v242 = vsub.s32 0, %v241
      %v243 = vrot.slane %v238, %v242
      %v245 = vmul.f32 %v206, %v243
      %v246 = vmul.f32 %v207, %v243
      %v247 = vmul.f32 %v208, %v243
      %v248 = vmul.f32 %v209, %v243
      %v249 = vmul.f32 %v210, %v243
      %v250 = vmul.f32 %v211, %v243
      %v251 = vmul.f32 %v212, %v243
      %v252 = vmul.f32 %v213, %v243
      %v253 = vmul.f32 %v214, %v243
      %v254 = vmul.f32 %v215, %v243
      %v255 = vmul.f32 %v216, %v243
      %v256 = vmul.f32 %v217, %v243
      %v257 = vmul.f32 %v218, %v243
      %v258 = vmul.f32 %v219, %v243
      %v259 = vmul.f32 %v220, %v243
      %v260 = vmul.f32 %v221, %v243
      %v261 = vmul.f32 %v222, %v243
      %v262 = vmul.f32 %v223, %v243
      %v263 = vmul.f32 %v224, %v243
      %v264 = vmul.f32 %v225, %v243
      %v265 = vmul.f32 %v226, %v243
      %v266 = vmul.f32 %v227, %v243
      %v267 = vmul.f32 %v228, %v243
      %v268 = vmul.f32 %v229, %v243
      %v269 = vmul.f32 %v230, %v243
      %v270 = vmul.f32 %v231, %v243
      %v271 = vmul.f32 %v232, %v243
      %v272 = vmul.f32 %v233, %v243
      %v273 = vmul.f32 %v234, %v243
      %v274 = vmul.f32 %v235, %v243
      %v275 = vmul.f32 %v236, %v243
      %v276 = vmul.f32 %v237, %v243
      %v277 = vld [vmem:[%s2] sm:$0x1]
      %v279 = vlaneseq
      %v280 = vshrl.u32 %v279, 7
      %v281 = vsub.s32 0, %v280
      %v282 = vrot.slane %v277, %v281
      %v284 = vadd.f32 %v245, %v282
      %v285 = vadd.f32 %v246, %v282
      %v286 = vadd.f32 %v247, %v282
      %v287 = vadd.f32 %v248, %v282
      %v288 = vadd.f32 %v249, %v282
      %v289 = vadd.f32 %v250, %v282
      %v290 = vadd.f32 %v251, %v282
      %v291 = vadd.f32 %v252, %v282
      %v292 = vadd.f32 %v253, %v282
      %v293 = vadd.f32 %v254, %v282
      %v294 = vadd.f32 %v255, %v282
      %v295 = vadd.f32 %v256, %v282
      %v296 = vadd.f32 %v257, %v282
      %v297 = vadd.f32 %v258, %v282
      %v298 = vadd.f32 %v259, %v282
      %v299 = vadd.f32 %v260, %v282
      %v300 = vadd.f32 %v261, %v282
      %v301 = vadd.f32 %v262, %v282
      %v302 = vadd.f32 %v263, %v282
      %v303 = vadd.f32 %v264, %v282
      %v304 = vadd.f32 %v265, %v282
      %v305 = vadd.f32 %v266, %v282
      %v306 = vadd.f32 %v267, %v282
      %v307 = vadd.f32 %v268, %v282
      %v308 = vadd.f32 %v269, %v282
      %v309 = vadd.f32 %v270, %v282
      %v310 = vadd.f32 %v271, %v282
      %v311 = vadd.f32 %v272, %v282
      %v312 = vadd.f32 %v273, %v282
      %v313 = vadd.f32 %v274, %v282
      %v314 = vadd.f32 %v275, %v282
      %v315 = vadd.f32 %v276, %v282
      %v316 = vpack.c.bf16 %v285, %v284
      %v317 = vpack.c.bf16 %v287, %v286
      %v318 = vpack.c.bf16 %v289, %v288
      %v319 = vpack.c.bf16 %v291, %v290
      %v320 = vpack.c.bf16 %v293, %v292
      %v321 = vpack.c.bf16 %v295, %v294
      %v322 = vpack.c.bf16 %v297, %v296
      %v323 = vpack.c.bf16 %v299, %v298
      %v324 = vpack.c.bf16 %v301, %v300
      %v325 = vpack.c.bf16 %v303, %v302
      %v326 = vpack.c.bf16 %v305, %v304
      %v327 = vpack.c.bf16 %v307, %v306
      %v328 = vpack.c.bf16 %v309, %v308
      %v329 = vpack.c.bf16 %v311, %v310
      %v330 = vpack.c.bf16 %v313, %v312
      %v331 = vpack.c.bf16 %v315, %v314
      %v348 = vunpack.c.l.b16 %v316
      %v349 = vunpack.c.h.b16 %v316
      %v350 = vunpack.c.l.b16 %v317
      %v351 = vunpack.c.h.b16 %v317
      %v352 = vunpack.c.l.b16 %v318
      %v353 = vunpack.c.h.b16 %v318
      %v354 = vunpack.c.l.b16 %v319
      %v355 = vunpack.c.h.b16 %v319
      %v356 = vunpack.c.l.b16 %v320
      %v357 = vunpack.c.h.b16 %v320
      %v358 = vunpack.c.l.b16 %v321
      %v359 = vunpack.c.h.b16 %v321
      %v360 = vunpack.c.l.b16 %v322
      %v361 = vunpack.c.h.b16 %v322
      %v362 = vunpack.c.l.b16 %v323
      %v363 = vunpack.c.h.b16 %v323
      %v364 = vunpack.c.l.b16 %v324
      %v365 = vunpack.c.h.b16 %v324
      %v366 = vunpack.c.l.b16 %v325
      %v367 = vunpack.c.h.b16 %v325
      %v368 = vunpack.c.l.b16 %v326
      %v369 = vunpack.c.h.b16 %v326
      %v370 = vunpack.c.l.b16 %v327
      %v371 = vunpack.c.h.b16 %v327
      %v372 = vunpack.c.l.b16 %v328
      %v373 = vunpack.c.h.b16 %v328
      %v374 = vunpack.c.l.b16 %v329
      %v375 = vunpack.c.h.b16 %v329
      %v376 = vunpack.c.l.b16 %v330
      %v377 = vunpack.c.h.b16 %v330
      %v378 = vunpack.c.l.b16 %v331
      %v379 = vunpack.c.h.b16 %v331
      %v380 = vpack.c.b16 %v348, %v348
      %v381 = vpack.c.b16 %v349, %v349
      %v382 = vpack.c.b16 %v350, %v350
      %v383 = vpack.c.b16 %v351, %v351
      %v384 = vpack.c.b16 %v352, %v352
      %v385 = vpack.c.b16 %v353, %v353
      %v386 = vpack.c.b16 %v354, %v354
      %v387 = vpack.c.b16 %v355, %v355
      %v388 = vpack.c.b16 %v356, %v356
      %v389 = vpack.c.b16 %v357, %v357
      %v390 = vpack.c.b16 %v358, %v358
      %v391 = vpack.c.b16 %v359, %v359
      %v392 = vpack.c.b16 %v360, %v360
      %v393 = vpack.c.b16 %v361, %v361
      %v394 = vpack.c.b16 %v362, %v362
      %v395 = vpack.c.b16 %v363, %v363
      %v396 = vpack.c.b16 %v364, %v364
      %v397 = vpack.c.b16 %v365, %v365
      %v398 = vpack.c.b16 %v366, %v366
      %v399 = vpack.c.b16 %v367, %v367
      %v400 = vpack.c.b16 %v368, %v368
      %v401 = vpack.c.b16 %v369, %v369
      %v402 = vpack.c.b16 %v370, %v370
      %v403 = vpack.c.b16 %v371, %v371
      %v404 = vpack.c.b16 %v372, %v372
      %v405 = vpack.c.b16 %v373, %v373
      %v406 = vpack.c.b16 %v374, %v374
      %v407 = vpack.c.b16 %v375, %v375
      %v408 = vpack.c.b16 %v376, %v376
      %v409 = vpack.c.b16 %v377, %v377
      %v410 = vpack.c.b16 %v378, %v378
      %v411 = vpack.c.b16 %v379, %v379
      %444 = vst [vmem:[%s172] sm:$0xf] %v380
      %445 = vst [vmem:[%s172 + $0x4] sm:$0xf] %v381
      %446 = vst [vmem:[%s172 + $0x8] sm:$0xf] %v382
      %447 = vst [vmem:[%s172 + $0xc] sm:$0xf] %v383
      %448 = vst [vmem:[%s172 + $0x10] sm:$0xf] %v384
      %449 = vst [vmem:[%s172 + $0x14] sm:$0xf] %v385
      %450 = vst [vmem:[%s172 + $0x18] sm:$0xf] %v386
      %451 = vst [vmem:[%s172 + $0x1c] sm:$0xf] %v387
      %452 = vst [vmem:[%s172 + $0x20] sm:$0xf] %v388
      %453 = vst [vmem:[%s172 + $0x24] sm:$0xf] %v389
      %454 = vst [vmem:[%s172 + $0x28] sm:$0xf] %v390
      %455 = vst [vmem:[%s172 + $0x2c] sm:$0xf] %v391
      %456 = vst [vmem:[%s172 + $0x30] sm:$0xf] %v392
      %457 = vst [vmem:[%s172 + $0x34] sm:$0xf] %v393
      %458 = vst [vmem:[%s172 + $0x38] sm:$0xf] %v394
      %459 = vst [vmem:[%s172 + $0x3c] sm:$0xf] %v395
      %460 = vst [vmem:[%s172 + $0x40] sm:$0xf] %v396
      %461 = vst [vmem:[%s172 + $0x44] sm:$0xf] %v397
      %462 = vst [vmem:[%s172 + $0x48] sm:$0xf] %v398
      %463 = vst [vmem:[%s172 + $0x4c] sm:$0xf] %v399
      %464 = vst [vmem:[%s172 + $0x50] sm:$0xf] %v400
      %465 = vst [vmem:[%s172 + $0x54] sm:$0xf] %v401
      %466 = vst [vmem:[%s172 + $0x58] sm:$0xf] %v402
      %467 = vst [vmem:[%s172 + $0x5c] sm:$0xf] %v403
      %468 = vst [vmem:[%s172 + $0x60] sm:$0xf] %v404
      %469 = vst [vmem:[%s172 + $0x64] sm:$0xf] %v405
      %470 = vst [vmem:[%s172 + $0x68] sm:$0xf] %v406
      %471 = vst [vmem:[%s172 + $0x6c] sm:$0xf] %v407
      %472 = vst [vmem:[%s172 + $0x70] sm:$0xf] %v408
      %473 = vst [vmem:[%s172 + $0x74] sm:$0xf] %v409
      %474 = vst [vmem:[%s172 + $0x78] sm:$0xf] %v410
      %475 = vst [vmem:[%s172 + $0x7c] sm:$0xf] %v411
      %s476 = smul.u32 32, %s14
      %p477 = scmp.lt.s32.totalorder %s476, 63
      %s478 = scalar_select %p477, %s476, 63
      %s479 = smul.addr %s478, 4
      %s480 = scalar_lea.vmem %s3, %s479
      // Predicated region
      $region33: #{basic_conv2d_forward.3} parent=31 // pred_check
        %p481 = pneg %p100
      $region34: #{basic_conv2d_forward.3} parent=31 // pred_check_branch
        %483 = sbr.rel (%p481) target = $region36
      $region35: #{basic_conv2d_forward.3} parent=31 // pred_region
        %s484 = smul.u32 32, %s14
      $region36: #{basic_conv2d_forward.3} parent=31 // pred_fallthru
        _
    $region32: #{basic_conv2d_forward.3} parent=5 // pred_fallthru
      _
    %p485 = scmp.le.s32.totalorder 2, %s9
    // Predicated region
    $region37: #{basic_conv2d_forward.3} parent=5 // pred_check
      %p486 = pneg %p485
    $region38: #{basic_conv2d_forward.3} parent=5 // pred_check_branch
      %488 = sbr.rel (%p486) target = $region40
    $region39: #{basic_conv2d_forward.3} parent=5 // pred_region
      %s489 = ssub.s32 %s9, 2
      // Predicated region
      $region41: #{basic_conv2d_forward.3} parent=39 // pred_check
        %p490 = pneg %p106
      $region42: #{basic_conv2d_forward.3} parent=39 // pred_check_branch
        %492 = sbr.rel (%p490) target = $region44
      $region43: #{basic_conv2d_forward.3} parent=39 // pred_region
        %s493 = smul.u32 32, %s15
        %p494 = scmp.lt.s32.totalorder %s493, 63
        %s495 = scalar_select %p494, %s493, 63
        %s496 = smul.addr %s495, 4
        %s497 = scalar_lea.vmem %s3, %s496
      $region44: #{basic_conv2d_forward.3} parent=39 // pred_fallthru
        _
    $region40: #{basic_conv2d_forward.3} parent=5 // pred_fallthru
      _
  $region6: #{basic_conv2d_forward.3} parent=0 // loop_footer
    %s13 = sadd.s32 1, %s9
  $region7: #{basic_conv2d_forward.3} parent=0 // loop_footer_branch
    %8 = sbr.rel target = $region3
  $region8: #{basic_conv2d_forward.3} parent=0 // loop_exit
    _

// kernel: basic_conv2d_forward.2
$region0: #{basic_conv2d_forward.2}
  #allocation0 [shape = 'u32[]', space=smem, size = 0x4, offset = 0x4, fixed_abs, tag = 'smem constant byte address 0x4 - core index']
  #allocation1 [shape = 'u32[144,128]{1,0:T(1,128)}', space=vmem, size = 0x12000, scoped, tag = 'internal scratch']
  %s0 = inlined_call_operand.vmem [shape: bf16[512,48], index: 0, kind: input, shape index: {}]
  %s1 = inlined_call_operand.vmem [shape: bf16[48,128], index: 1, kind: input, shape index: {}]
  %s2 = inlined_call_operand.vmem [shape: bf16[512,128], index: 2, kind: output, shape index: {0}]
  %s3 = inlined_call_operand.vmem [shape: f32[2,2,128], index: 3, kind: output, shape index: {1}]
  %4 = xla_tuple %s2, %s3
  %s5 = sld [smem:[#allocation0]]
  $region49: #{basic_conv2d_forward.2} parent=0
    _
  %s7 = ssub.s32 1, %s5
  %s8 = scalar_select 0, %s7, %s5
  loop: start=0, step=1, limit=4
  $region2: #{basic_conv2d_forward.2} parent=0 // loop_pre_header
    _
  $region3: #{basic_conv2d_forward.2} parent=0 // loop_header
    %s10 = sphi 0, %s14
    %p11 = scmp.ge.s32.totalorder %s10, 4
    %s20 = sphi 0, %s22
    %s23 = sphi 0, %s20
    %s24 = sphi 0, %s23
    %s40 = sphi 0, %s24
    %s44 = sphi 0, %s44
    %s46 = sphi 0, %s44
    %s47 = sphi 0, %s46
    %s61 = sphi 0, %s47
    %s67 = sphi 0, %s69
    %s70 = sphi 0, %s67
    %s71 = sphi 0, %s70
    %s87 = sphi 0, %s71
    %s93 = sphi 0, %s95
    %s96 = sphi 0, %s93
    %s97 = sphi 0, %s96
    %s113 = sphi 0, %s97
  $region4: #{basic_conv2d_forward.2} parent=0 // loop_header_branch
    %13 = sbr.rel (%p11) target = $region8
  $region5: #{basic_conv2d_forward.2} parent=0 // loop_body
    %s15 = ssub.s32 %s10, 1
    %s16 = ssub.s32 %s10, 2
    %s17 = sadd.s32 %s10, 1
    %s18 = ssub.s32 %s10, %s17
    %p19 = scmp.eq.s32.totalorder %s18, 0
    %s21 = sadd.s32 %s20, 1
    %s22 = scalar_select %p19, %s20, %s21
    %p25 = pneg %p19
    %p26 = scmp.eq.s32.totalorder %s10, 1
    %p27 = por %p25, %p26
    %p28 = scmp.ne.s32.totalorder %s20, %s23
    %p29 = scmp.eq.s32.totalorder %s10, 0
    %p30 = por %p28, %p29
    %p31 = scmp.ne.s32.totalorder %s20, %s23
    %p32 = scmp.eq.s32.totalorder %s15, 1
    %p33 = por %p31, %p32
    %p34 = scmp.ne.s32.totalorder %s23, %s24
    %p35 = scmp.eq.s32.totalorder %s15, 0
    %p36 = por %p34, %p35
    %p37 = scmp.ne.s32.totalorder %s23, %s24
    %p38 = scmp.eq.s32.totalorder %s16, 1
    %p39 = por %p37, %p38
    %p41 = scmp.ne.s32.totalorder %s24, %s40
    %p42 = scmp.eq.s32.totalorder %s16, 0
    %p43 = por %p41, %p42
    %s45 = sadd.s32 %s44, 1
    %p48 = scmp.eq.s32.totalorder %s10, 1
    %p49 = scmp.ne.s32.totalorder %s44, %s46
    %p50 = scmp.eq.s32.totalorder %s10, 0
    %p51 = por %p49, %p50
    %p52 = scmp.ne.s32.totalorder %s44, %s46
    %p53 = scmp.eq.s32.totalorder %s15, 1
    %p54 = por %p52, %p53
    %p55 = scmp.ne.s32.totalorder %s46, %s47
    %p56 = scmp.eq.s32.totalorder %s15, 0
    %p57 = por %p55, %p56
    %p58 = scmp.ne.s32.totalorder %s46, %s47
    %p59 = scmp.eq.s32.totalorder %s16, 1
    %p60 = por %p58, %p59
    %p62 = scmp.ne.s32.totalorder %s47, %s61
    %p63 = scmp.eq.s32.totalorder %s16, 0
    %p64 = por %p62, %p63
    %s65 = ssub.s32 %s10, %s17
    %p66 = scmp.eq.s32.totalorder %s65, 0
    %s68 = sadd.s32 %s67, 1
    %s69 = scalar_select %p66, %s67, %s68
    %p72 = pneg %p66
    %p73 = scmp.eq.s32.totalorder %s10, 1
    %p74 = por %p72, %p73
    %p75 = scmp.ne.s32.totalorder %s67, %s70
    %p76 = scmp.eq.s32.totalorder %s10, 0
    %p77 = por %p75, %p76
    %p78 = scmp.ne.s32.totalorder %s67, %s70
    %p79 = scmp.eq.s32.totalorder %s15, 1
    %p80 = por %p78, %p79
    %p81 = scmp.ne.s32.totalorder %s70, %s71
    %p82 = scmp.eq.s32.totalorder %s15, 0
    %p83 = por %p81, %p82
    %p84 = scmp.ne.s32.totalorder %s70, %s71
    %p85 = scmp.eq.s32.totalorder %s16, 1
    %p86 = por %p84, %p85
    %p88 = scmp.ne.s32.totalorder %s71, %s87
    %p89 = scmp.eq.s32.totalorder %s16, 0
    %p90 = por %p88, %p89
    %s91 = ssub.s32 %s10, %s17
    %p92 = scmp.eq.s32.totalorder %s91, 0
    %s94 = sadd.s32 %s93, 1
    %s95 = scalar_select %p92, %s93, %s94
    %p98 = pneg %p92
    %p99 = scmp.eq.s32.totalorder %s10, 1
    %p100 = por %p98, %p99
    %p101 = scmp.ne.s32.totalorder %s93, %s96
    %p102 = scmp.eq.s32.totalorder %s10, 0
    %p103 = por %p101, %p102
    %p104 = scmp.ne.s32.totalorder %s93, %s96
    %p105 = scmp.eq.s32.totalorder %s15, 1
    %p106 = por %p104, %p105
    %p107 = scmp.ne.s32.totalorder %s96, %s97
    %p108 = scmp.eq.s32.totalorder %s15, 0
    %p109 = por %p107, %p108
    %p110 = scmp.ne.s32.totalorder %s96, %s97
    %p111 = scmp.eq.s32.totalorder %s16, 1
    %p112 = por %p110, %p111
    %p114 = scmp.ne.s32.totalorder %s97, %s113
    %p115 = scmp.eq.s32.totalorder %s16, 0
    %p116 = por %p114, %p115
    %p117 = scmp.le.s32.totalorder 1, %s10
    %p118 = scmp.lt.s32.totalorder %s10, 3
    %p119 = pnand %p117, %p118
    %p120 = pneg %p119
    // Predicated region
    $region9: #{basic_conv2d_forward.2} parent=5 // pred_check
      _
    $region10: #{basic_conv2d_forward.2} parent=5 // pred_check_branch
      %122 = sbr.rel (%p119) target = $region12
    $region11: #{basic_conv2d_forward.2} parent=5 // pred_region
      %s123 = ssub.s32 %s10, 1
      // Predicated region
      $region13: #{basic_conv2d_forward.2} parent=11 // pred_check
        %p124 = pneg %p57
      $region14: #{basic_conv2d_forward.2} parent=11 // pred_check_branch
        %126 = sbr.rel (%p124) target = $region16
      $region15: #{basic_conv2d_forward.2} parent=11 // pred_region
        _
      $region16: #{basic_conv2d_forward.2} parent=11 // pred_fallthru
        _
    $region12: #{basic_conv2d_forward.2} parent=5 // pred_fallthru
      _
    %p127 = scmp.lt.s32.totalorder %s10, 2
    // Predicated region
    $region17: #{basic_conv2d_forward.2} parent=5 // pred_check
      %p128 = pneg %p127
    $region18: #{basic_conv2d_forward.2} parent=5 // pred_check_branch
      %130 = sbr.rel (%p128) target = $region20
    $region19: #{basic_conv2d_forward.2} parent=5 // pred_region
      // Predicated region
      $region21: #{basic_conv2d_forward.2} parent=19 // pred_check
        %p131 = pneg %p30
      $region22: #{basic_conv2d_forward.2} parent=19 // pred_check_branch
        %133 = sbr.rel (%p131) target = $region24
      $region23: #{basic_conv2d_forward.2} parent=19 // pred_region
        %s134 = smul.u32 32, %s10
        %p135 = scmp.lt.s32.totalorder %s134, 63
        %s136 = scalar_select %p135, %s134, 63
        %s137 = smul.addr %s136, 4
        %s138 = scalar_lea.vmem %s0, %s137
        %s139 = smul.u32 32, %s10
      $region24: #{basic_conv2d_forward.2} parent=19 // pred_fallthru
        _
    $region20: #{basic_conv2d_forward.2} parent=5 // pred_fallthru
      _
    %p140 = scmp.le.s32.totalorder 1, %s10
    %p141 = scmp.lt.s32.totalorder %s10, 3
    %p142 = pnand %p140, %p141
    %p143 = pneg %p142
    // Predicated region
    $region25: #{basic_conv2d_forward.2} parent=5 // pred_check
      _
    $region26: #{basic_conv2d_forward.2} parent=5 // pred_check_branch
      %145 = sbr.rel (%p142) target = $region28
    $region27: #{basic_conv2d_forward.2} parent=5 // pred_region
      %s146 = ssub.s32 %s10, 1
      %s147 = smul.u32 32, %s15
      %p148 = scmp.lt.s32.totalorder %s147, 63
      %s149 = scalar_select %p148, %s147, 63
      %s150 = smul.addr %s149, 4
      %s151 = scalar_lea.vmem %s0, %s150
      %p152 = pneg %p36
      %p153 = pneg %p33
      %p154 = pneg %p57
      %p155 = pneg %p54
      %p156 = pneg %p83
      %p157 = pneg %p80
      %s158 = smul.u32 32, %s15
      %p159 = scmp.lt.s32.totalorder %s158, 63
      %s160 = scalar_select %p159, %s158, 63
      %s161 = smul.addr %s160, 4
      %s162 = scalar_lea.vmem %s2, %s161
      %p163 = pneg %p109
      %p164 = pneg %p106
      %p165 = scmp.lt.s32.totalorder %s15, 1
      %s166 = scalar_select %p165, %s15, 1
      %s167 = smul.addr %s166, 2
      %s168 = scalar_lea.vmem %s3, %s167
      %s169 = smul.u32 32, %s15
      %p170 = scmp.lt.s32.totalorder %s169, 63
      %s171 = scalar_select %p170, %s169, 63
      %s172 = smul.addr %s171, 4
      %s173 = scalar_lea.vmem %s0, %s172
      %s174 = smul.u32 32, %s15
      %s175 = smul.u32 32, %s15
      %p176 = scmp.lt.s32.totalorder %s175, 63
      %s177 = scalar_select %p176, %s175, 63
      %s178 = smul.addr %s177, 4
      %s179 = scalar_lea.vmem %s2, %s178
      %s180 = smul.u32 32, %s15
      %p181 = scmp.lt.s32.totalorder %s15, 1
      %s182 = scalar_select %p181, %s15, 1
      %s183 = smul.addr %s182, 2
      %s184 = scalar_lea.vmem %s3, %s183
      %v186 = vld [vmem:[%s173] sm:$0xf]
      %v187 = vld [vmem:[%s173 + $0x4] sm:$0xf]
      %v188 = vld [vmem:[%s173 + $0x8] sm:$0xf]
      %v189 = vld [vmem:[%s173 + $0xc] sm:$0xf]
      %v190 = vld [vmem:[%s173 + $0x10] sm:$0xf]
      %v191 = vld [vmem:[%s173 + $0x14] sm:$0xf]
      %v192 = vld [vmem:[%s173 + $0x18] sm:$0xf]
      %v193 = vld [vmem:[%s173 + $0x1c] sm:$0xf]
      %v194 = vld [vmem:[%s173 + $0x20] sm:$0xf]
      %v195 = vld [vmem:[%s173 + $0x24] sm:$0xf]
      %v196 = vld [vmem:[%s173 + $0x28] sm:$0xf]
      %v197 = vld [vmem:[%s173 + $0x2c] sm:$0xf]
      %v198 = vld [vmem:[%s173 + $0x30] sm:$0xf]
      %v199 = vld [vmem:[%s173 + $0x34] sm:$0xf]
      %v200 = vld [vmem:[%s173 + $0x38] sm:$0xf]
      %v201 = vld [vmem:[%s173 + $0x3c] sm:$0xf]
      %v202 = vld [vmem:[%s173 + $0x40] sm:$0xf]
      %v203 = vld [vmem:[%s173 + $0x44] sm:$0xf]
      %v204 = vld [vmem:[%s173 + $0x48] sm:$0xf]
      %v205 = vld [vmem:[%s173 + $0x4c] sm:$0xf]
      %v206 = vld [vmem:[%s173 + $0x50] sm:$0xf]
      %v207 = vld [vmem:[%s173 + $0x54] sm:$0xf]
      %v208 = vld [vmem:[%s173 + $0x58] sm:$0xf]
      %v209 = vld [vmem:[%s173 + $0x5c] sm:$0xf]
      %v210 = vld [vmem:[%s173 + $0x60] sm:$0xf]
      %v211 = vld [vmem:[%s173 + $0x64] sm:$0xf]
      %v212 = vld [vmem:[%s173 + $0x68] sm:$0xf]
      %v213 = vld [vmem:[%s173 + $0x6c] sm:$0xf]
      %v214 = vld [vmem:[%s173 + $0x70] sm:$0xf]
      %v215 = vld [vmem:[%s173 + $0x74] sm:$0xf]
      %v216 = vld [vmem:[%s173 + $0x78] sm:$0xf]
      %v217 = vld [vmem:[%s173 + $0x7c] sm:$0xf]
      %v218 = vld [vmem:[%s1] sm:$0xf]
      %v219 = vld [vmem:[%s1 + $0x4] sm:$0xf]
      %v220 = vld [vmem:[%s1 + $0x8] sm:$0xf]
      %v221 = vld [vmem:[%s1 + $0xc] sm:$0xf]
      %v222 = vld [vmem:[%s1 + $0x10] sm:$0xf]
      %v223 = vld [vmem:[%s1 + $0x14] sm:$0xf]
      %v256 = vunpack.c.l.b16 %v186
      %v257 = vunpack.c.l.b16 %v187
      %v258 = vunpack.c.l.b16 %v188
      %v259 = vunpack.c.l.b16 %v189
      %v260 = vunpack.c.l.b16 %v190
      %v261 = vunpack.c.l.b16 %v191
      %v262 = vunpack.c.l.b16 %v192
      %v263 = vunpack.c.l.b16 %v193
      %v264 = vunpack.c.l.b16 %v194
      %v265 = vunpack.c.l.b16 %v195
      %v266 = vunpack.c.l.b16 %v196
      %v267 = vunpack.c.l.b16 %v197
      %v268 = vunpack.c.l.b16 %v198
      %v269 = vunpack.c.l.b16 %v199
      %v270 = vunpack.c.l.b16 %v200
      %v271 = vunpack.c.l.b16 %v201
      %v272 = vunpack.c.l.b16 %v202
      %v273 = vunpack.c.l.b16 %v203
      %v274 = vunpack.c.l.b16 %v204
      %v275 = vunpack.c.l.b16 %v205
      %v276 = vunpack.c.l.b16 %v206
      %v277 = vunpack.c.l.b16 %v207
      %v278 = vunpack.c.l.b16 %v208
      %v279 = vunpack.c.l.b16 %v209
      %v280 = vunpack.c.l.b16 %v210
      %v281 = vunpack.c.l.b16 %v211
      %v282 = vunpack.c.l.b16 %v212
      %v283 = vunpack.c.l.b16 %v213
      %v284 = vunpack.c.l.b16 %v214
      %v285 = vunpack.c.l.b16 %v215
      %v286 = vunpack.c.l.b16 %v216
      %v287 = vunpack.c.l.b16 %v217
      %v288 = vpack.c.b16 %v257, %v256
      %v289 = vpack.c.b16 %v259, %v258
      %v290 = vpack.c.b16 %v261, %v260
      %v291 = vpack.c.b16 %v263, %v262
      %v292 = vpack.c.b16 %v265, %v264
      %v293 = vpack.c.b16 %v267, %v266
      %v294 = vpack.c.b16 %v269, %v268
      %v295 = vpack.c.b16 %v271, %v270
      %v296 = vpack.c.b16 %v273, %v272
      %v297 = vpack.c.b16 %v275, %v274
      %v298 = vpack.c.b16 %v277, %v276
      %v299 = vpack.c.b16 %v279, %v278
      %v300 = vpack.c.b16 %v281, %v280
      %v301 = vpack.c.b16 %v283, %v282
      %v302 = vpack.c.b16 %v285, %v284
      %v303 = vpack.c.b16 %v287, %v286
      %v310 = vunpack.c.l.b16 %v218
      %v311 = vunpack.c.l.b16 %v219
      %v312 = vunpack.c.l.b16 %v220
      %v313 = vunpack.c.l.b16 %v221
      %v314 = vunpack.c.l.b16 %v222
      %v315 = vunpack.c.l.b16 %v223
      %v316 = vpack.c.b16 %v311, %v310
      %v317 = vpack.c.b16 %v313, %v312
      %v318 = vpack.c.b16 %v315, %v314
      %vm322 = vcmask 392192
      %v324 = vsel %vm322, %v288, 0
      %v327 = vsel %vm322, %v289, 0
      %v330 = vsel %vm322, %v290, 0
      %v333 = vsel %vm322, %v291, 0
      %v336 = vsel %vm322, %v292, 0
      %v339 = vsel %vm322, %v293, 0
      %v342 = vsel %vm322, %v294, 0
      %v345 = vsel %vm322, %v295, 0
      %v348 = vsel %vm322, %v296, 0
      %v351 = vsel %vm322, %v297, 0
      %v354 = vsel %vm322, %v298, 0
      %v357 = vsel %vm322, %v299, 0
      %v360 = vsel %vm322, %v300, 0
      %v363 = vsel %vm322, %v301, 0
      %v366 = vsel %vm322, %v302, 0
      %v369 = vsel %vm322, %v303, 0
      %371 = vmatprep.subr.bf16.mxu0 0
      %372 = vmatpush1.bf16.msra.mxu0 0
      %373 = vmatprep.subr.bf16.mxu0 0
      %374 = vmatpush1.bf16.msra.mxu0 0
      %375 = vmatprep.subr.bf16.mxu0 0
      %376 = vmatpush1.bf16.msra.mxu0 0
      %377 = vmatprep.subr.bf16.mxu0 0
      %378 = vmatpush1.bf16.msra.mxu0 0
      %379 = vmatprep.subr.bf16.mxu0 0
      %380 = vmatpush1.bf16.msra.mxu0 0
      %381 = vmatprep.subr.bf16.mxu0 0
      %382 = vmatpush1.bf16.msra.mxu0 %v318
      %383 = vmatprep.subr.bf16.mxu0 0
      %384 = vmatpush1.bf16.msra.mxu0 %v317
      %385 = vmatprep.subr.bf16.mxu0 0
      %386 = vmatpush1.bf16.msra.mxu0 %v316
      %387 = vmatprep.subr.bf16.mxu0 0
      %388 = vmatpush2.bf16.msra.mxu0 0
      %389 = vmatprep.subr.bf16.mxu0 0
      %390 = vmatpush2.bf16.msra.mxu0 0
      %391 = vmatprep.subr.bf16.mxu0 0
      %392 = vmatpush2.bf16.msra.mxu0 0
      %393 = vmatprep.subr.bf16.mxu0 0
      %394 = vmatpush2.bf16.msra.mxu0 0
      %395 = vmatprep.subr.bf16.mxu0 0
      %396 = vmatpush2.bf16.msra.mxu0 0
      %397 = vmatprep.subr.bf16.mxu0 0
      %398 = vmatpush2.bf16.msra.mxu0 0
      %399 = vmatprep.subr.bf16.mxu0 0
      %400 = vmatpush2.bf16.msra.mxu0 0
      %401 = vmatprep.subr.bf16.mxu0 0
      %402 = vmatpush2.bf16.msra.mxu0 0
      %403 = vmatprep.mubr.bf16.mxu0 0
      %404 = vmatmul.mubr.bf16.gmra.mxu0 %v324
      %v405 = vpop.f32.mrf.mxu0
      %v406 = vadd.f32 0.0, %v405
      %v407 = vpop.f32.mrf.mxu0
      %v408 = vpop.f32.mrf.mxu0
      %v409 = vadd.f32 0.0, %v408
      %v410 = vpop.f32.mrf.mxu0
      %411 = vmatprep.mubr.bf16.mxu0 0
      %412 = vmatmul.mubr.bf16.gmra.mxu0 %v327
      %v413 = vpop.f32.mrf.mxu0
      %v414 = vadd.f32 0.0, %v413
      %v415 = vpop.f32.mrf.mxu0
      %v416 = vpop.f32.mrf.mxu0
      %v417 = vadd.f32 0.0, %v416
      %v418 = vpop.f32.mrf.mxu0
      %419 = vmatprep.mubr.bf16.mxu0 0
      %420 = vmatmul.mubr.bf16.gmra.mxu0 %v330
      %v421 = vpop.f32.mrf.mxu0
      %v422 = vadd.f32 0.0, %v421
      %v423 = vpop.f32.mrf.mxu0
      %v424 = vpop.f32.mrf.mxu0
      %v425 = vadd.f32 0.0, %v424
      %v426 = vpop.f32.mrf.mxu0
      %427 = vmatprep.mubr.bf16.mxu0 0
      %428 = vmatmul.mubr.bf16.gmra.mxu0 %v333
      %v429 = vpop.f32.mrf.mxu0
      %v430 = vadd.f32 0.0, %v429
      %v431 = vpop.f32.mrf.mxu0
      %v432 = vpop.f32.mrf.mxu0
      %v433 = vadd.f32 0.0, %v432
      %v434 = vpop.f32.mrf.mxu0
      %435 = vmatprep.mubr.bf16.mxu0 0
      %436 = vmatmul.mubr.bf16.gmra.mxu0 %v336
      %v437 = vpop.f32.mrf.mxu0
      %v438 = vadd.f32 0.0, %v437
      %v439 = vpop.f32.mrf.mxu0
      %v440 = vpop.f32.mrf.mxu0
      %v441 = vadd.f32 0.0, %v440
      %v442 = vpop.f32.mrf.mxu0
      %443 = vmatprep.mubr.bf16.mxu0 0
      %444 = vmatmul.mubr.bf16.gmra.mxu0 %v339
      %v445 = vpop.f32.mrf.mxu0
      %v446 = vadd.f32 0.0, %v445
      %v447 = vpop.f32.mrf.mxu0
      %v448 = vpop.f32.mrf.mxu0
      %v449 = vadd.f32 0.0, %v448
      %v450 = vpop.f32.mrf.mxu0
      %451 = vmatprep.mubr.bf16.mxu0 0
      %452 = vmatmul.mubr.bf16.gmra.mxu0 %v342
      %v453 = vpop.f32.mrf.mxu0
      %v454 = vadd.f32 0.0, %v453
      %v455 = vpop.f32.mrf.mxu0
      %v456 = vpop.f32.mrf.mxu0
      %v457 = vadd.f32 0.0, %v456
      %v458 = vpop.f32.mrf.mxu0
      %459 = vmatprep.mubr.bf16.mxu0 0
      %460 = vmatmul.mubr.bf16.gmra.mxu0 %v345
      %v461 = vpop.f32.mrf.mxu0
      %v462 = vadd.f32 0.0, %v461
      %v463 = vpop.f32.mrf.mxu0
      %v464 = vpop.f32.mrf.mxu0
      %v465 = vadd.f32 0.0, %v464
      %v466 = vpop.f32.mrf.mxu0
      %467 = vmatprep.mubr.bf16.mxu0 0
      %468 = vmatmul.mubr.bf16.gmra.mxu0 %v348
      %v469 = vpop.f32.mrf.mxu0
      %v470 = vadd.f32 0.0, %v469
      %v471 = vpop.f32.mrf.mxu0
      %v472 = vpop.f32.mrf.mxu0
      %v473 = vadd.f32 0.0, %v472
      %v474 = vpop.f32.mrf.mxu0
      %475 = vmatprep.mubr.bf16.mxu0 0
      %476 = vmatmul.mubr.bf16.gmra.mxu0 %v351
      %v477 = vpop.f32.mrf.mxu0
      %v478 = vadd.f32 0.0, %v477
      %v479 = vpop.f32.mrf.mxu0
      %v480 = vpop.f32.mrf.mxu0
      %v481 = vadd.f32 0.0, %v480
      %v482 = vpop.f32.mrf.mxu0
      %483 = vmatprep.mubr.bf16.mxu0 0
      %484 = vmatmul.mubr.bf16.gmra.mxu0 %v354
      %v485 = vpop.f32.mrf.mxu0
      %v486 = vadd.f32 0.0, %v485
      %v487 = vpop.f32.mrf.mxu0
      %v488 = vpop.f32.mrf.mxu0
      %v489 = vadd.f32 0.0, %v488
      %v490 = vpop.f32.mrf.mxu0
      %491 = vmatprep.mubr.bf16.mxu0 0
      %492 = vmatmul.mubr.bf16.gmra.mxu0 %v357
      %v493 = vpop.f32.mrf.mxu0
      %v494 = vadd.f32 0.0, %v493
      %v495 = vpop.f32.mrf.mxu0
      %v496 = vpop.f32.mrf.mxu0
      %v497 = vadd.f32 0.0, %v496
      %v498 = vpop.f32.mrf.mxu0
      %499 = vmatprep.mubr.bf16.mxu0 0
      %500 = vmatmul.mubr.bf16.gmra.mxu0 %v360
      %v501 = vpop.f32.mrf.mxu0
      %v502 = vadd.f32 0.0, %v501
      %v503 = vpop.f32.mrf.mxu0
      %v504 = vpop.f32.mrf.mxu0
      %v505 = vadd.f32 0.0, %v504
      %v506 = vpop.f32.mrf.mxu0
      %507 = vmatprep.mubr.bf16.mxu0 0
      %508 = vmatmul.mubr.bf16.gmra.mxu0 %v363
      %v509 = vpop.f32.mrf.mxu0
      %v510 = vadd.f32 0.0, %v509
      %v511 = vpop.f32.mrf.mxu0
      %v512 = vpop.f32.mrf.mxu0
      %v513 = vadd.f32 0.0, %v512
      %v514 = vpop.f32.mrf.mxu0
      %515 = vmatprep.mubr.bf16.mxu0 0
      %516 = vmatmul.mubr.bf16.gmra.mxu0 %v366
      %v517 = vpop.f32.mrf.mxu0
      %v518 = vadd.f32 0.0, %v517
      %v519 = vpop.f32.mrf.mxu0
      %v520 = vpop.f32.mrf.mxu0
      %v521 = vadd.f32 0.0, %v520
      %v522 = vpop.f32.mrf.mxu0
      %523 = vmatprep.mubr.bf16.mxu0 0
      %524 = vmatmul.mubr.bf16.gmra.mxu0 %v369
      %v525 = vpop.f32.mrf.mxu0
      %v526 = vadd.f32 0.0, %v525
      %v527 = vpop.f32.mrf.mxu0
      %v528 = vpop.f32.mrf.mxu0
      %v529 = vadd.f32 0.0, %v528
      %v530 = vpop.f32.mrf.mxu0
      %531 = vdwg.mxu0
      %v532 = vmax.f32 %v406, 0.0
      %v533 = vmax.f32 %v409, 0.0
      %v534 = vmax.f32 %v414, 0.0
      %v535 = vmax.f32 %v417, 0.0
      %v536 = vmax.f32 %v422, 0.0
      %v537 = vmax.f32 %v425, 0.0
      %v538 = vmax.f32 %v430, 0.0
      %v539 = vmax.f32 %v433, 0.0
      %v540 = vmax.f32 %v438, 0.0
      %v541 = vmax.f32 %v441, 0.0
      %v542 = vmax.f32 %v446, 0.0
      %v543 = vmax.f32 %v449, 0.0
      %v544 = vmax.f32 %v454, 0.0
      %v545 = vmax.f32 %v457, 0.0
      %v546 = vmax.f32 %v462, 0.0
      %v547 = vmax.f32 %v465, 0.0
      %v548 = vmax.f32 %v470, 0.0
      %v549 = vmax.f32 %v473, 0.0
      %v550 = vmax.f32 %v478, 0.0
      %v551 = vmax.f32 %v481, 0.0
      %v552 = vmax.f32 %v486, 0.0
      %v553 = vmax.f32 %v489, 0.0
      %v554 = vmax.f32 %v494, 0.0
      %v555 = vmax.f32 %v497, 0.0
      %v556 = vmax.f32 %v502, 0.0
      %v557 = vmax.f32 %v505, 0.0
      %v558 = vmax.f32 %v510, 0.0
      %v559 = vmax.f32 %v513, 0.0
      %v560 = vmax.f32 %v518, 0.0
      %v561 = vmax.f32 %v521, 0.0
      %v562 = vmax.f32 %v526, 0.0
      %v563 = vmax.f32 %v529, 0.0
      %v564 = vpack.c.bf16 %v533, %v532
      %v565 = vpack.c.bf16 %v535, %v534
      %v566 = vpack.c.bf16 %v537, %v536
      %v567 = vpack.c.bf16 %v539, %v538
      %v568 = vpack.c.bf16 %v541, %v540
      %v569 = vpack.c.bf16 %v543, %v542
      %v570 = vpack.c.bf16 %v545, %v544
      %v571 = vpack.c.bf16 %v547, %v546
      %v572 = vpack.c.bf16 %v549, %v548
      %v573 = vpack.c.bf16 %v551, %v550
      %v574 = vpack.c.bf16 %v553, %v552
      %v575 = vpack.c.bf16 %v555, %v554
      %v576 = vpack.c.bf16 %v557, %v556
      %v577 = vpack.c.bf16 %v559, %v558
      %v578 = vpack.c.bf16 %v561, %v560
      %v579 = vpack.c.bf16 %v563, %v562
      %v596 = vunpack.c.l.b16 %v564
      %v597 = vunpack.c.h.b16 %v564
      %v598 = vunpack.c.l.b16 %v565
      %v599 = vunpack.c.h.b16 %v565
      %v600 = vunpack.c.l.b16 %v566
      %v601 = vunpack.c.h.b16 %v566
      %v602 = vunpack.c.l.b16 %v567
      %v603 = vunpack.c.h.b16 %v567
      %v604 = vunpack.c.l.b16 %v568
      %v605 = vunpack.c.h.b16 %v568
      %v606 = vunpack.c.l.b16 %v569
      %v607 = vunpack.c.h.b16 %v569
      %v608 = vunpack.c.l.b16 %v570
      %v609 = vunpack.c.h.b16 %v570
      %v610 = vunpack.c.l.b16 %v571
      %v611 = vunpack.c.h.b16 %v571
      %v612 = vunpack.c.l.b16 %v572
      %v613 = vunpack.c.h.b16 %v572
      %v614 = vunpack.c.l.b16 %v573
      %v615 = vunpack.c.h.b16 %v573
      %v616 = vunpack.c.l.b16 %v574
      %v617 = vunpack.c.h.b16 %v574
      %v618 = vunpack.c.l.b16 %v575
      %v619 = vunpack.c.h.b16 %v575
      %v620 = vunpack.c.l.b16 %v576
      %v621 = vunpack.c.h.b16 %v576
      %v622 = vunpack.c.l.b16 %v577
      %v623 = vunpack.c.h.b16 %v577
      %v624 = vunpack.c.l.b16 %v578
      %v625 = vunpack.c.h.b16 %v578
      %v626 = vunpack.c.l.b16 %v579
      %v627 = vunpack.c.h.b16 %v579
      %v628 = vpack.c.b16 %v596, %v596
      %v629 = vpack.c.b16 %v597, %v597
      %v630 = vpack.c.b16 %v598, %v598
      %v631 = vpack.c.b16 %v599, %v599
      %v632 = vpack.c.b16 %v600, %v600
      %v633 = vpack.c.b16 %v601, %v601
      %v634 = vpack.c.b16 %v602, %v602
      %v635 = vpack.c.b16 %v603, %v603
      %v636 = vpack.c.b16 %v604, %v604
      %v637 = vpack.c.b16 %v605, %v605
      %v638 = vpack.c.b16 %v606, %v606
      %v639 = vpack.c.b16 %v607, %v607
      %v640 = vpack.c.b16 %v608, %v608
      %v641 = vpack.c.b16 %v609, %v609
      %v642 = vpack.c.b16 %v610, %v610
      %v643 = vpack.c.b16 %v611, %v611
      %v644 = vpack.c.b16 %v612, %v612
      %v645 = vpack.c.b16 %v613, %v613
      %v646 = vpack.c.b16 %v614, %v614
      %v647 = vpack.c.b16 %v615, %v615
      %v648 = vpack.c.b16 %v616, %v616
      %v649 = vpack.c.b16 %v617, %v617
      %v650 = vpack.c.b16 %v618, %v618
      %v651 = vpack.c.b16 %v619, %v619
      %v652 = vpack.c.b16 %v620, %v620
      %v653 = vpack.c.b16 %v621, %v621
      %v654 = vpack.c.b16 %v622, %v622
      %v655 = vpack.c.b16 %v623, %v623
      %v656 = vpack.c.b16 %v624, %v624
      %v657 = vpack.c.b16 %v625, %v625
      %v658 = vpack.c.b16 %v626, %v626
      %v659 = vpack.c.b16 %v627, %v627
      %692 = vst [vmem:[%s179] sm:$0xf] %v628
      %693 = vst [vmem:[%s179 + $0x4] sm:$0xf] %v629
      %694 = vst [vmem:[%s179 + $0x8] sm:$0xf] %v630
      %695 = vst [vmem:[%s179 + $0xc] sm:$0xf] %v631
      %696 = vst [vmem:[%s179 + $0x10] sm:$0xf] %v632
      %697 = vst [vmem:[%s179 + $0x14] sm:$0xf] %v633
      %698 = vst [vmem:[%s179 + $0x18] sm:$0xf] %v634
      %699 = vst [vmem:[%s179 + $0x1c] sm:$0xf] %v635
      %700 = vst [vmem:[%s179 + $0x20] sm:$0xf] %v636
      %701 = vst [vmem:[%s179 + $0x24] sm:$0xf] %v637
      %702 = vst [vmem:[%s179 + $0x28] sm:$0xf] %v638
      %703 = vst [vmem:[%s179 + $0x2c] sm:$0xf] %v639
      %704 = vst [vmem:[%s179 + $0x30] sm:$0xf] %v640
      %705 = vst [vmem:[%s179 + $0x34] sm:$0xf] %v641
      %706 = vst [vmem:[%s179 + $0x38] sm:$0xf] %v642
      %707 = vst [vmem:[%s179 + $0x3c] sm:$0xf] %v643
      %708 = vst [vmem:[%s179 + $0x40] sm:$0xf] %v644
      %709 = vst [vmem:[%s179 + $0x44] sm:$0xf] %v645
      %710 = vst [vmem:[%s179 + $0x48] sm:$0xf] %v646
      %711 = vst [vmem:[%s179 + $0x4c] sm:$0xf] %v647
      %712 = vst [vmem:[%s179 + $0x50] sm:$0xf] %v648
      %713 = vst [vmem:[%s179 + $0x54] sm:$0xf] %v649
      %714 = vst [vmem:[%s179 + $0x58] sm:$0xf] %v650
      %715 = vst [vmem:[%s179 + $0x5c] sm:$0xf] %v651
      %716 = vst [vmem:[%s179 + $0x60] sm:$0xf] %v652
      %717 = vst [vmem:[%s179 + $0x64] sm:$0xf] %v653
      %718 = vst [vmem:[%s179 + $0x68] sm:$0xf] %v654
      %719 = vst [vmem:[%s179 + $0x6c] sm:$0xf] %v655
      %720 = vst [vmem:[%s179 + $0x70] sm:$0xf] %v656
      %721 = vst [vmem:[%s179 + $0x74] sm:$0xf] %v657
      %722 = vst [vmem:[%s179 + $0x78] sm:$0xf] %v658
      %723 = vst [vmem:[%s179 + $0x7c] sm:$0xf] %v659
      %v724 = vadd.f32 %v532, %v533
      %v725 = vadd.f32 %v724, %v534
      %v726 = vadd.f32 %v725, %v535
      %v727 = vadd.f32 %v726, %v536
      %v728 = vadd.f32 %v727, %v537
      %v729 = vadd.f32 %v728, %v538
      %v730 = vadd.f32 %v729, %v539
      %v731 = vadd.f32 %v730, %v540
      %v732 = vadd.f32 %v731, %v541
      %v733 = vadd.f32 %v732, %v542
      %v734 = vadd.f32 %v733, %v543
      %v735 = vadd.f32 %v734, %v544
      %v736 = vadd.f32 %v735, %v545
      %v737 = vadd.f32 %v736, %v546
      %v738 = vadd.f32 %v737, %v547
      %v739 = vadd.f32 %v738, %v548
      %v740 = vadd.f32 %v739, %v549
      %v741 = vadd.f32 %v740, %v550
      %v742 = vadd.f32 %v741, %v551
      %v743 = vadd.f32 %v742, %v552
      %v744 = vadd.f32 %v743, %v553
      %v745 = vadd.f32 %v744, %v554
      %v746 = vadd.f32 %v745, %v555
      %v747 = vadd.f32 %v746, %v556
      %v748 = vadd.f32 %v747, %v557
      %v749 = vadd.f32 %v748, %v558
      %v750 = vadd.f32 %v749, %v559
      %v751 = vadd.f32 %v750, %v560
      %v752 = vadd.f32 %v751, %v561
      %v753 = vadd.f32 %v752, %v562
      %v754 = vadd.f32 %v753, %v563
      %v755 = vrot.slane %v754, 4
      %v756 = vadd.f32 %v754, %v755
      %v757 = vrot.slane %v756, 2
      %v758 = vadd.f32 %v756, %v757
      %v759 = vrot.slane %v758, 1
      %v760 = vadd.f32 %v758, %v759
      %v761 = vmul.f32 %v532, %v532
      %v762 = vmul.f32 %v533, %v533
      %v763 = vmul.f32 %v534, %v534
      %v764 = vmul.f32 %v535, %v535
      %v765 = vmul.f32 %v536, %v536
      %v766 = vmul.f32 %v537, %v537
      %v767 = vmul.f32 %v538, %v538
      %v768 = vmul.f32 %v539, %v539
      %v769 = vmul.f32 %v540, %v540
      %v770 = vmul.f32 %v541, %v541
      %v771 = vmul.f32 %v542, %v542
      %v772 = vmul.f32 %v543, %v543
      %v773 = vmul.f32 %v544, %v544
      %v774 = vmul.f32 %v545, %v545
      %v775 = vmul.f32 %v546, %v546
      %v776 = vmul.f32 %v547, %v547
      %v777 = vmul.f32 %v548, %v548
      %v778 = vmul.f32 %v549, %v549
      %v779 = vmul.f32 %v550, %v550
      %v780 = vmul.f32 %v551, %v551
      %v781 = vmul.f32 %v552, %v552
      %v782 = vmul.f32 %v553, %v553
      %v783 = vmul.f32 %v554, %v554
      %v784 = vmul.f32 %v555, %v555
      %v785 = vmul.f32 %v556, %v556
      %v786 = vmul.f32 %v557, %v557
      %v787 = vmul.f32 %v558, %v558
      %v788 = vmul.f32 %v559, %v559
      %v789 = vmul.f32 %v560, %v560
      %v790 = vmul.f32 %v561, %v561
      %v791 = vmul.f32 %v562, %v562
      %v792 = vmul.f32 %v563, %v563
      %v793 = vadd.f32 %v761, %v762
      %v794 = vadd.f32 %v793, %v763
      %v795 = vadd.f32 %v794, %v764
      %v796 = vadd.f32 %v795, %v765
      %v797 = vadd.f32 %v796, %v766
      %v798 = vadd.f32 %v797, %v767
      %v799 = vadd.f32 %v798, %v768
      %v800 = vadd.f32 %v799, %v769
      %v801 = vadd.f32 %v800, %v770
      %v802 = vadd.f32 %v801, %v771
      %v803 = vadd.f32 %v802, %v772
      %v804 = vadd.f32 %v803, %v773
      %v805 = vadd.f32 %v804, %v774
      %v806 = vadd.f32 %v805, %v775
      %v807 = vadd.f32 %v806, %v776
      %v808 = vadd.f32 %v807, %v777
      %v809 = vadd.f32 %v808, %v778
      %v810 = vadd.f32 %v809, %v779
      %v811 = vadd.f32 %v810, %v780
      %v812 = vadd.f32 %v811, %v781
      %v813 = vadd.f32 %v812, %v782
      %v814 = vadd.f32 %v813, %v783
      %v815 = vadd.f32 %v814, %v784
      %v816 = vadd.f32 %v815, %v785
      %v817 = vadd.f32 %v816, %v786
      %v818 = vadd.f32 %v817, %v787
      %v819 = vadd.f32 %v818, %v788
      %v820 = vadd.f32 %v819, %v789
      %v821 = vadd.f32 %v820, %v790
      %v822 = vadd.f32 %v821, %v791
      %v823 = vadd.f32 %v822, %v792
      %v824 = vrot.slane %v823, 4
      %v825 = vadd.f32 %v823, %v824
      %v826 = vrot.slane %v825, 2
      %v827 = vadd.f32 %v825, %v826
      %v828 = vrot.slane %v827, 1
      %v829 = vadd.f32 %v827, %v828
      %vm830 = vcmask 1040384
      %v831 = vsel %vm830, %v760, %v829
      %832 = vst [vmem:[%s184] sm:$0x3] %v831
      %s833 = smul.u32 32, %s15
      %p834 = scmp.lt.s32.totalorder %s833, 63
      %s835 = scalar_select %p834, %s833, 63
      %s836 = smul.addr %s835, 4
      %s837 = scalar_lea.vmem %s2, %s836
      %p838 = scmp.lt.s32.totalorder %s15, 1
      %s839 = scalar_select %p838, %s15, 1
      %s840 = smul.addr %s839, 2
      %s841 = scalar_lea.vmem %s3, %s840
      // Predicated region
      $region29: #{basic_conv2d_forward.2} parent=27 // pred_check
        %p842 = pneg %p80
      $region30: #{basic_conv2d_forward.2} parent=27 // pred_check_branch
        %844 = sbr.rel (%p842) target = $region32
      $region31: #{basic_conv2d_forward.2} parent=27 // pred_region
        %s845 = smul.u32 32, %s15
      $region32: #{basic_conv2d_forward.2} parent=27 // pred_fallthru
        _
      // Predicated region
      $region33: #{basic_conv2d_forward.2} parent=27 // pred_check
        %p846 = pneg %p106
      $region34: #{basic_conv2d_forward.2} parent=27 // pred_check_branch
        %848 = sbr.rel (%p846) target = $region36
      $region35: #{basic_conv2d_forward.2} parent=27 // pred_region
        _
      $region36: #{basic_conv2d_forward.2} parent=27 // pred_fallthru
        _
    $region28: #{basic_conv2d_forward.2} parent=5 // pred_fallthru
      _
    %p849 = scmp.le.s32.totalorder 2, %s10
    // Predicated region
    $region37: #{basic_conv2d_forward.2} parent=5 // pred_check
      %p850 = pneg %p849
    $region38: #{basic_conv2d_forward.2} parent=5 // pred_check_branch
      %852 = sbr.rel (%p850) target = $region40
    $region39: #{basic_conv2d_forward.2} parent=5 // pred_region
      %s853 = ssub.s32 %s10, 2
      // Predicated region
      $region41: #{basic_conv2d_forward.2} parent=39 // pred_check
        %p854 = pneg %p86
      $region42: #{basic_conv2d_forward.2} parent=39 // pred_check_branch
        %856 = sbr.rel (%p854) target = $region44
      $region43: #{basic_conv2d_forward.2} parent=39 // pred_region
        %s857 = smul.u32 32, %s16
        %p858 = scmp.lt.s32.totalorder %s857, 63
        %s859 = scalar_select %p858, %s857, 63
        %s860 = smul.addr %s859, 4
        %s861 = scalar_lea.vmem %s2, %s860
      $region44: #{basic_conv2d_forward.2} parent=39 // pred_fallthru
        _
      // Predicated region
      $region45: #{basic_conv2d_forward.2} parent=39 // pred_check
        %p862 = pneg %p112
      $region46: #{basic_conv2d_forward.2} parent=39 // pred_check_branch
        %864 = sbr.rel (%p862) target = $region48
      $region47: #{basic_conv2d_forward.2} parent=39 // pred_region
        %p865 = scmp.lt.s32.totalorder %s16, 1
        %s866 = scalar_select %p865, %s16, 1
        %s867 = smul.addr %s866, 2
        %s868 = scalar_lea.vmem %s3, %s867
      $region48: #{basic_conv2d_forward.2} parent=39 // pred_fallthru
        _
    $region40: #{basic_conv2d_forward.2} parent=5 // pred_fallthru
      _
  $region6: #{basic_conv2d_forward.2} parent=0 // loop_footer
    %s14 = sadd.s32 1, %s10
  $region7: #{basic_conv2d_forward.2} parent=0 // loop_footer_branch
    %9 = sbr.rel target = $region3
  $region8: #{basic_conv2d_forward.2} parent=0 // loop_exit
    _

</llo_original>
